<compile_context>
chip_gen: v7x
topology: tpu7x:2x2x1
jax: 0.10.0
libtpu: 0.0.40
codegen_flags: <defaults>
</compile_context>

<pallas_src>
import functools

import jax
import jax.numpy as jnp
from jax import lax
from jax.experimental import pallas as pl
from jax.experimental.pallas import tpu as pltpu


def _round_up(x, m):
    return ((x + m - 1) // m) * m


def _bigram_kernel(idx_ref, tgt_ref, emb_ref, logits_ref, nll_ref):
    """One grid step per (TILE_N, V) token tile."""
    idx_tile = idx_ref[...]      # (TILE_N, 1) int32
    tgt_tile = tgt_ref[...]      # (TILE_N, 1) int32
    emb = emb_ref[...]           # (V, V) float32, VMEM-resident (constant block)

    tile_n = idx_tile.shape[0]
    v = emb.shape[1]
    col = lax.broadcasted_iota(jnp.int32, (tile_n, v), 1)

    # Gather E[idx, :] as a one-hot matmul on the MXU.
    onehot_idx = (col == idx_tile).astype(jnp.float32)
    logits = jnp.dot(onehot_idx, emb, preferred_element_type=jnp.float32)
    logits_ref[...] = logits

    # Numerically stable per-row cross entropy: lse(logits) - logits[target].
    m = jnp.max(logits, axis=-1, keepdims=True)
    lse = m + jnp.log(jnp.sum(jnp.exp(logits - m), axis=-1, keepdims=True))
    onehot_tgt = (col == tgt_tile).astype(jnp.float32)
    tval = jnp.sum(onehot_tgt * logits, axis=-1, keepdims=True)
    nll_ref[...] = lse - tval    # (TILE_N, 1)


@functools.partial(jax.jit, static_argnames=("vocab_size",))
def bigram_forward(emb_table, idx, targets=None, *, vocab_size):
    """emb_table: (V, V) f32; idx, targets: (B, T) int.

    With targets: returns (logits of shape (B*T, V), scalar loss) -- matching
    the PyTorch module. Without targets: returns (logits (B, T, V), None).
    """
    B, T = idx.shape
    N = B * T
    V = vocab_size

    # TILE_N: multiple of 8 sublanes; 256 amortizes per-step overhead and
    # fills the MXU at large N, while a tiny N collapses to one grid step.
    tile_n = 256 if N >= 256 else _round_up(N, 8)
    NP = _round_up(N, tile_n)
    G = NP // tile_n

    idx_flat = idx.reshape(N).astype(jnp.int32)
    tgt = targets if targets is not None else jnp.zeros_like(idx)
    tgt_flat = tgt.reshape(N).astype(jnp.int32)
    pad = NP - N
    if pad:
        idx_flat = jnp.pad(idx_flat, (0, pad))     # padded rows sliced off below
        tgt_flat = jnp.pad(tgt_flat, (0, pad))
    idx2d = idx_flat.reshape(NP, 1)
    tgt2d = tgt_flat.reshape(NP, 1)

    logits_p, nll_p = pl.pallas_call(
        _bigram_kernel,
        out_shape=(
            jax.ShapeDtypeStruct((NP, V), jnp.float32),
            jax.ShapeDtypeStruct((NP, 1), jnp.float32),
        ),
        grid=(G,),
        in_specs=[
            pl.BlockSpec((tile_n, 1), lambda i: (i, 0)),   # token ids tile
            pl.BlockSpec((tile_n, 1), lambda i: (i, 0)),   # targets tile
            pl.BlockSpec((V, V), lambda i: (0, 0)),        # resident embedding table
        ],
        out_specs=(
            pl.BlockSpec((tile_n, V), lambda i: (i, 0)),   # lane-dense logits tile
            pl.BlockSpec((tile_n, 1), lambda i: (i, 0)),   # per-token NLL
        ),
        compiler_params=pltpu.CompilerParams(
            dimension_semantics=("parallel",),
        ),
    )(idx2d, tgt2d, emb_table)

    logits = logits_p[:N]                                  # drop padded rows
    if targets is None:
        return logits.reshape(B, T, V), None
    loss = jnp.sum(nll_p[:N, 0]) / jnp.float32(N)          # mean over token count N
    return logits, loss


if __name__ == "__main__":
    VOCAB_SIZE = 128   # config.config.VOCAB_SIZE
    B, T = 2, 8

    key = jax.random.PRNGKey(0)
    k_emb, k_idx, k_tgt = jax.random.split(key, 3)

    # Deterministic synthetic parameters: nn.Embedding(V, V) weight ~ N(0, 1).
    emb_table = jax.random.normal(k_emb, (VOCAB_SIZE, VOCAB_SIZE), dtype=jnp.float32)
    idx = jax.random.randint(k_idx, (B, T), 0, VOCAB_SIZE, dtype=jnp.int32)
    targets = jax.random.randint(k_tgt, (B, T), 0, VOCAB_SIZE, dtype=jnp.int32)

    logits, loss = bigram_forward(emb_table, idx, targets, vocab_size=VOCAB_SIZE)
    jax.block_until_ready((logits, loss))

    # Pure-JAX reference (matches PyTorch: logits.view(B*T, C), F.cross_entropy).
    N = B * T
    ref_logits = emb_table[idx.reshape(N)]                 # (N, V)
    ref_ls = jax.nn.log_softmax(ref_logits, axis=-1)
    ref_loss = -jnp.mean(ref_ls[jnp.arange(N), targets.reshape(N)])

    assert logits.shape == (N, VOCAB_SIZE), "logits shape mismatch"
    assert jnp.allclose(logits, ref_logits, atol=1e-5), "logits mismatch"
    assert jnp.allclose(loss, ref_loss, atol=1e-4), "loss mismatch"

    # Also exercise the no-targets path (logits reshaped to (B, T, V), loss None).
    logits_bt, none_loss = bigram_forward(emb_table, idx, vocab_size=VOCAB_SIZE)
    jax.block_until_ready(logits_bt)
    assert none_loss is None and logits_bt.shape == (B, T, VOCAB_SIZE)
    assert jnp.allclose(logits_bt.reshape(N, VOCAB_SIZE), ref_logits, atol=1e-5)

    print("KERNEL_OK")
</pallas_src>

<mosaic_0001>
module attributes {stable_mosaic.version = 11 : i64} {
  func.func @_bigram_kernel(%arg0: i32, %arg1: memref<16x1xi32, #tpu.memory_space<vmem>>, %arg2: memref<16x1xi32, #tpu.memory_space<vmem>>, %arg3: memref<128x128xf32, #tpu.memory_space<vmem>>, %arg4: memref<16x128xf32, #tpu.memory_space<vmem>>, %arg5: memref<16x1xf32, #tpu.memory_space<vmem>>) attributes {dimension_semantics = [#tpu.dimension_semantics<parallel>], iteration_bounds = array<i64: 1>, scalar_prefetch = 0 : i64, scratch_operands = 0 : i64, tpu.core_type = #tpu.core_type<tc>, window_params = [{transform_indices = @transform_0, window_bounds = array<i64: 16, 1>}, {transform_indices = @transform_1, window_bounds = array<i64: 16, 1>}, {pipeline_mode = #tpu.pipeline_mode<synchronous>, transform_indices = @transform_2, window_bounds = array<i64: 128, 128>}, {transform_indices = @transform_3, window_bounds = array<i64: 16, 128>}, {transform_indices = @transform_4, window_bounds = array<i64: 16, 1>}]} {
    %c0 = arith.constant 0 : index
    %c0_0 = arith.constant 0 : index
    %0 = vector.load %arg1[%c0, %c0_0] : memref<16x1xi32, #tpu.memory_space<vmem>>, vector<16x1xi32>
    %c0_1 = arith.constant 0 : index
    %c0_2 = arith.constant 0 : index
    %1 = vector.load %arg2[%c0_1, %c0_2] : memref<16x1xi32, #tpu.memory_space<vmem>>, vector<16x1xi32>
    %c0_3 = arith.constant 0 : index
    %c0_4 = arith.constant 0 : index
    %2 = vector.load %arg3[%c0_3, %c0_4] : memref<128x128xf32, #tpu.memory_space<vmem>>, vector<128x128xf32>
    %3 = tpu.iota {dimensions = array<i32: 1>} : vector<16x128xi32>
    %4 = vector.broadcast %0 : vector<16x1xi32> to vector<16x128xi32>
    %5 = arith.cmpi eq, %3, %4 : vector<16x128xi32>
    %6 = arith.extui %5 : vector<16x128xi1> to vector<16x128xi32>
    %7 = arith.sitofp %6 : vector<16x128xi32> to vector<16x128xf32>
    %cst = arith.constant dense<0.000000e+00> : vector<16x128xf32>
    %8 = tpu.matmul %7, %2, %cst {dimension_numbers = #tpu.dot_dimension_numbers<[1], [0], [0], [1], [0, 0, 1, 1], [], []>} : vector<16x128xf32>, vector<128x128xf32>, vector<16x128xf32> -> vector<16x128xf32>
    %c0_5 = arith.constant 0 : index
    %c0_6 = arith.constant 0 : index
    %9 = vector.load %arg4[%c0_5, %c0_6] : memref<16x128xf32, #tpu.memory_space<vmem>>, vector<16x128xf32>
    tpu.vector_store %arg4[%c0_5, %c0_6], %8 {strides = array<i32>} : memref<16x128xf32, #tpu.memory_space<vmem>>, vector<16x128xf32>,
    %cst_7 = arith.constant dense<0xFF800000> : vector<16xf32>
    %10 = vector.multi_reduction <maximumf>, %8, %cst_7 [1] : vector<16x128xf32> to vector<16xf32>
    %11 = vector.shape_cast %10 : vector<16xf32> to vector<16x1xf32>
    %12 = vector.broadcast %11 : vector<16x1xf32> to vector<16x128xf32>
    %13 = arith.subf %8, %12 : vector<16x128xf32>
    %14 = math.exp %13 : vector<16x128xf32>
    %cst_8 = arith.constant dense<0.000000e+00> : vector<16xf32>
    %15 = vector.multi_reduction <add>, %14, %cst_8 [1] : vector<16x128xf32> to vector<16xf32>
    %16 = vector.shape_cast %15 : vector<16xf32> to vector<16x1xf32>
    %17 = math.log %16 : vector<16x1xf32>
    %18 = arith.addf %11, %17 : vector<16x1xf32>
    %19 = vector.broadcast %1 : vector<16x1xi32> to vector<16x128xi32>
    %20 = arith.cmpi eq, %3, %19 : vector<16x128xi32>
    %21 = arith.extui %20 : vector<16x128xi1> to vector<16x128xi32>
    %22 = arith.sitofp %21 : vector<16x128xi32> to vector<16x128xf32>
    %23 = arith.mulf %22, %8 : vector<16x128xf32>
    %cst_9 = arith.constant dense<0.000000e+00> : vector<16xf32>
    %24 = vector.multi_reduction <add>, %23, %cst_9 [1] : vector<16x128xf32> to vector<16xf32>
    %25 = vector.shape_cast %24 : vector<16xf32> to vector<16x1xf32>
    %26 = arith.subf %18, %25 : vector<16x1xf32>
    %c0_10 = arith.constant 0 : index
    %c0_11 = arith.constant 0 : index
    %27 = vector.load %arg5[%c0_10, %c0_11] : memref<16x1xf32, #tpu.memory_space<vmem>>, vector<16x1xf32>
    tpu.vector_store %arg5[%c0_10, %c0_11], %26 {strides = array<i32>} : memref<16x1xf32, #tpu.memory_space<vmem>>, vector<16x1xf32>,
    return
  }
  func.func @transform_0(%arg0: i32) -> (i32, i32) {
    %c0_i32 = arith.constant 0 : i32
    %c0_i32_0 = arith.constant 0 : i32
    return %arg0, %c0_i32 : i32, i32
  }
  func.func @transform_1(%arg0: i32) -> (i32, i32) {
    %c0_i32 = arith.constant 0 : i32
    %c0_i32_0 = arith.constant 0 : i32
    return %arg0, %c0_i32 : i32, i32
  }
  func.func @transform_2(%arg0: i32) -> (i32, i32) {
    %c0_i32 = arith.constant 0 : i32
    %c0_i32_0 = arith.constant 0 : i32
    %c0_i32_1 = arith.constant 0 : i32
    return %c0_i32, %c0_i32_0 : i32, i32
  }
  func.func @transform_3(%arg0: i32) -> (i32, i32) {
    %c0_i32 = arith.constant 0 : i32
    %c0_i32_0 = arith.constant 0 : i32
    return %arg0, %c0_i32 : i32, i32
  }
  func.func @transform_4(%arg0: i32) -> (i32, i32) {
    %c0_i32 = arith.constant 0 : i32
    %c0_i32_0 = arith.constant 0 : i32
    return %arg0, %c0_i32 : i32, i32
  }
}

</mosaic_0001>

<llo_original>
// kernel: bigram_forward.1
$region0: #{bigram_forward.1}
  #allocation0 [shape = 'u32[]', space=smem, size = 0x4, offset = 0x4, fixed_abs, tag = 'smem constant byte address 0x4 - core index']
  #allocation1 [shape = 'u32[144,128]{1,0:T(1,128)}', space=vmem, size = 0x12000, scoped, tag = 'internal scratch']
  %s0 = inlined_call_operand.vmem [shape: s32[16,1], index: 0, kind: input, shape index: {}]
  %s1 = inlined_call_operand.vmem [shape: s32[16,1], index: 1, kind: input, shape index: {}]
  %s2 = inlined_call_operand.hbm [shape: f32[128,128], index: 2, kind: input, shape index: {}]
  %s3 = inlined_call_operand.hbm [shape: f32[16,128], index: 3, kind: output, shape index: {0}]
  %s4 = inlined_call_operand.vmem [shape: f32[16,1], index: 4, kind: output, shape index: {1}]
  %5 = xla_tuple %s3, %s4
  %s6 = sld [smem:[#allocation0]]
  $region34: #{bigram_forward.1} parent=0
    _
  %s8 = ssub.s32 1, %s6
  %s9 = scalar_select 0, %s8, %s6
  $region1: #{bigram_forward.1} parent=0
    #allocation2 [shape = 'u8[65536]{0}', space=vmem, size = 0x10000, scoped, tag = 'input window, operand 2, single buffered']
    #allocation3 [shape = 's32[1]{0}', space=sflag, size = 0x4, scoped, tag = 'scoped memory for bigram_forward.1']
    #allocation4 [shape = 's32[1]{0}', space=sflag, size = 0x4, scoped, tag = 'scoped memory for bigram_forward.1']
    #allocation5 [shape = 'u8[8192]{0}', space=vmem, size = 0x2000, scoped, tag = 'output window, operand 0, single buffered']
    %10 = vsyncpa [#allocation3], 0
    %11 = vsyncpa [#allocation4], 0
    // Predicated region
    $region2: #{bigram_forward.1} parent=1 // pred_check
      _
    $region3: #{bigram_forward.1} parent=1 // pred_check_branch
      %13 = sbr.rel (0) target = $region5
    $region4: #{bigram_forward.1} parent=1 // pred_region
      _
    $region5: #{bigram_forward.1} parent=1 // pred_fallthru
      _
    // Predicated region
    $region6: #{bigram_forward.1} parent=1 // pred_check
      _
    $region7: #{bigram_forward.1} parent=1 // pred_check_branch
      %15 = sbr.rel (0) target = $region9
    $region8: #{bigram_forward.1} parent=1 // pred_region
      _
    $region9: #{bigram_forward.1} parent=1 // pred_fallthru
      _
    // Predicated region
    $region10: #{bigram_forward.1} parent=1 // pred_check
      _
    $region11: #{bigram_forward.1} parent=1 // pred_check_branch
      %17 = sbr.rel (0) target = $region13
    $region12: #{bigram_forward.1} parent=1 // pred_region
      %s19 = ssub.s32 2048, 2048
      %20 = vsyncadd [#allocation3], %s19
      %s21 = sshll.u32 [#allocation2], 4
      %s22 = int_to_ptr.vmem [resolvable:$true] %s21
      %27 = dma.hbm_to_vmem [thread:$0]  %s2, 2048, %s22, [#allocation3], 128, 128, 8
    $region13: #{bigram_forward.1} parent=1 // pred_fallthru
      _
    // Predicated region
    $region14: #{bigram_forward.1} parent=1 // pred_check
      _
    $region15: #{bigram_forward.1} parent=1 // pred_check_branch
      %29 = sbr.rel (0) target = $region17
    $region16: #{bigram_forward.1} parent=1 // pred_region
      %30 = dma.done [#allocation3], 2048
    $region17: #{bigram_forward.1} parent=1 // pred_fallthru
      _
    %v31 = vld [vmem:[%s0] sm:$0xff]
    %v32 = vld [vmem:[%s0 + $0x8] sm:$0xff]
    %v33 = vld [vmem:[%s1] sm:$0xff]
    %v34 = vld [vmem:[%s1 + $0x8] sm:$0xff]
    %v35 = vld [vmem:[#allocation2] sm:$0xff]
    %v36 = vld [vmem:[#allocation2 + $0x8] sm:$0xff]
    %v37 = vld [vmem:[#allocation2 + $0x10] sm:$0xff]
    %v38 = vld [vmem:[#allocation2 + $0x18] sm:$0xff]
    %v39 = vld [vmem:[#allocation2 + $0x20] sm:$0xff]
    %v40 = vld [vmem:[#allocation2 + $0x28] sm:$0xff]
    %v41 = vld [vmem:[#allocation2 + $0x30] sm:$0xff]
    %v42 = vld [vmem:[#allocation2 + $0x38] sm:$0xff]
    %v43 = vld [vmem:[#allocation2 + $0x40] sm:$0xff]
    %v44 = vld [vmem:[#allocation2 + $0x48] sm:$0xff]
    %v45 = vld [vmem:[#allocation2 + $0x50] sm:$0xff]
    %v46 = vld [vmem:[#allocation2 + $0x58] sm:$0xff]
    %v47 = vld [vmem:[#allocation2 + $0x60] sm:$0xff]
    %v48 = vld [vmem:[#allocation2 + $0x68] sm:$0xff]
    %v49 = vld [vmem:[#allocation2 + $0x70] sm:$0xff]
    %v50 = vld [vmem:[#allocation2 + $0x78] sm:$0xff]
    %v51 = vlaneseq
    %v52 = vand.u32 %v51, 127
    %53 = vset.pattern.permute.xlu0 0
    %54 = vperm.xlu0 %53, %v31
    %v55 = vpop.permute.xlu0 %54
    %56 = vset.pattern.permute.xlu0 0
    %57 = vperm.xlu0 %56, %v32
    %v58 = vpop.permute.xlu0 %57
    %vm59 = vcmp.eq.s32.totalorder %v52, %v55
    %vm60 = vcmp.eq.s32.totalorder %v52, %v58
    %v61 = vsel %vm59, 1, 0
    %v62 = vsel %vm60, 1, 0
    %v63 = vcvt.s32.f32 %v61
    %v64 = vcvt.s32.f32 %v62
    %65 = vmatprep.subr.mxu0 0.0
    %66 = vmatpush1.msra.mxu0 %v35
    %67 = vmatprep.subr.mxu0 0.0
    %68 = vmatpush1.msra.mxu0 %v36
    %69 = vmatprep.subr.mxu0 0.0
    %70 = vmatpush1.msra.mxu0 %v37
    %71 = vmatprep.subr.mxu0 0.0
    %72 = vmatpush1.msra.mxu0 %v38
    %73 = vmatprep.subr.mxu0 0.0
    %74 = vmatpush1.msra.mxu0 %v39
    %75 = vmatprep.subr.mxu0 0.0
    %76 = vmatpush1.msra.mxu0 %v40
    %77 = vmatprep.subr.mxu0 0.0
    %78 = vmatpush1.msra.mxu0 %v41
    %79 = vmatprep.subr.mxu0 0.0
    %80 = vmatpush1.msra.mxu0 %v42
    %81 = vmatprep.subr.mxu0 0.0
    %82 = vmatpush1.msra.mxu0 %v43
    %83 = vmatprep.subr.mxu0 0.0
    %84 = vmatpush1.msra.mxu0 %v44
    %85 = vmatprep.subr.mxu0 0.0
    %86 = vmatpush1.msra.mxu0 %v45
    %87 = vmatprep.subr.mxu0 0.0
    %88 = vmatpush1.msra.mxu0 %v46
    %89 = vmatprep.subr.mxu0 0.0
    %90 = vmatpush1.msra.mxu0 %v47
    %91 = vmatprep.subr.mxu0 0.0
    %92 = vmatpush1.msra.mxu0 %v48
    %93 = vmatprep.subr.mxu0 0.0
    %94 = vmatpush1.msra.mxu0 %v49
    %95 = vmatprep.subr.mxu0 0.0
    %96 = vmatpush1.msra.mxu0 %v50
    %97 = vmatprep.subr.mxu0 0.0
    %98 = vmatpush1.msra.mxu0 0.0
    %99 = vmatprep.subr.mxu0 0.0
    %100 = vmatpush1.msra.mxu0 0.0
    %101 = vmatprep.subr.mxu0 0.0
    %102 = vmatpush1.msra.mxu0 0.0
    %103 = vmatprep.subr.mxu0 0.0
    %104 = vmatpush1.msra.mxu0 0.0
    %105 = vmatprep.subr.mxu0 0.0
    %106 = vmatpush1.msra.mxu0 0.0
    %107 = vmatprep.subr.mxu0 0.0
    %108 = vmatpush1.msra.mxu0 0.0
    %109 = vmatprep.subr.mxu0 0.0
    %110 = vmatpush1.msra.mxu0 0.0
    %111 = vmatprep.subr.mxu0 0.0
    %112 = vmatpush1.msra.mxu0 0.0
    %113 = vmatprep.subr.mxu0 0.0
    %114 = vmatpush1.msra.mxu0 0.0
    %115 = vmatprep.subr.mxu0 0.0
    %116 = vmatpush1.msra.mxu0 0.0
    %117 = vmatprep.subr.mxu0 0.0
    %118 = vmatpush1.msra.mxu0 0.0
    %119 = vmatprep.subr.mxu0 0.0
    %120 = vmatpush1.msra.mxu0 0.0
    %121 = vmatprep.subr.mxu0 0.0
    %122 = vmatpush1.msra.mxu0 0.0
    %123 = vmatprep.subr.mxu0 0.0
    %124 = vmatpush1.msra.mxu0 0.0
    %125 = vmatprep.subr.mxu0 0.0
    %126 = vmatpush1.msra.mxu0 0.0
    %127 = vmatprep.subr.mxu0 0.0
    %128 = vmatpush1.msra.mxu0 0.0
    %129 = vmatprep.mubr.f32.mxu0 0.0
    %130 = vmatmul.mubr.f32.gmra.mrb[0].mxu0 %v63
    %v131 = vpop.f32.mrb[0].mxu0
    %v132 = vadd.f32 0.0, %v131
    %v133 = vpop.f32.mrb[0].mxu0
    %134 = vmatprep.mubr.f32.mxu0 0.0
    %135 = vmatmul.mubr.f32.gmra.mrb[0].mxu0 %v64
    %v136 = vpop.f32.mrb[0].mxu0
    %v137 = vadd.f32 0.0, %v136
    %v138 = vpop.f32.mrb[0].mxu0
    %139 = vdwg.mxu0
    %140 = vst [vmem:[#allocation5] sm:$0xff] %v132
    %141 = vst [vmem:[#allocation5 + $0x8] sm:$0xff] %v137
    %142 = vmax.xlane.f32.xlu0 %v132
    %v143 = vpop.xlane.xlu0 %142
    %144 = vmax.xlane.f32.xlu0 %v137
    %v145 = vpop.xlane.xlu0 %144
    %v146 = vsub.f32 %v132, %v143
    %v147 = vsub.f32 %v137, %v145
    %v148 = vmul.f32 %v146, 1.442695
    %v149 = vpow.pop %v148
    %v150 = vmul.f32 %v147, 1.442695
    %v151 = vpow.pop %v150
    %152 = vadd.xlane.f32.xlu0 %v149
    %v153 = vpop.xlane.xlu0 %152
    %154 = vadd.xlane.f32.xlu0 %v151
    %v155 = vpop.xlane.xlu0 %154
    %v156 = vlog2.pop %v153
    %v157 = vmul.f32 %v156, 0.6931472
    %v158 = vlog2.pop %v155
    %v159 = vmul.f32 %v158, 0.6931472
    %v160 = vadd.f32 %v143, %v157
    %v161 = vadd.f32 %v145, %v159
    %162 = vset.pattern.permute.xlu0 0
    %163 = vperm.xlu0 %162, %v33
    %v164 = vpop.permute.xlu0 %163
    %165 = vset.pattern.permute.xlu0 0
    %166 = vperm.xlu0 %165, %v34
    %v167 = vpop.permute.xlu0 %166
    %vm168 = vcmp.eq.s32.totalorder %v52, %v164
    %vm169 = vcmp.eq.s32.totalorder %v52, %v167
    %v170 = vsel %vm168, 1, 0
    %v171 = vsel %vm169, 1, 0
    %v172 = vcvt.s32.f32 %v170
    %v173 = vcvt.s32.f32 %v171
    %v174 = vmul.f32 %v172, %v132
    %v175 = vmul.f32 %v173, %v137
    %176 = vadd.xlane.f32.xlu0 %v174
    %v177 = vpop.xlane.xlu0 %176
    %178 = vadd.xlane.f32.xlu0 %v175
    %v179 = vpop.xlane.xlu0 %178
    %v180 = vsub.f32 %v160, %v177
    %v181 = vsub.f32 %v161, %v179
    %vm182 = vcmask 7168
    %183 = vst.msk [vmem:[%s4] sm:$0xff] %vm182, %v180
    %184 = vst.msk [vmem:[%s4 + $0x8] sm:$0xff] %vm182, %v181
    // Predicated region
    $region18: #{bigram_forward.1} parent=1 // pred_check
      _
    $region19: #{bigram_forward.1} parent=1 // pred_check_branch
      %186 = sbr.rel (0) target = $region21
    $region20: #{bigram_forward.1} parent=1 // pred_region
      %s188 = ssub.s32 256, 256
      %189 = vsyncadd [#allocation4], %s188
      %s190 = sshll.u32 [#allocation5], 4
      %s191 = int_to_ptr.vmem [resolvable:$true] %s190
      %196 = dma.vmem_to_hbm [thread:$0]  %s191, 256, %s3, [#allocation4], 128, 128, 8
    $region21: #{bigram_forward.1} parent=1 // pred_fallthru
      _
    // Predicated region
    $region22: #{bigram_forward.1} parent=1 // pred_check
      _
    $region23: #{bigram_forward.1} parent=1 // pred_check_branch
      %198 = sbr.rel (0) target = $region25
    $region24: #{bigram_forward.1} parent=1 // pred_region
      _
    $region25: #{bigram_forward.1} parent=1 // pred_fallthru
      _
    // Predicated region
    $region26: #{bigram_forward.1} parent=1 // pred_check
      _
    $region27: #{bigram_forward.1} parent=1 // pred_check_branch
      %200 = sbr.rel (0) target = $region29
    $region28: #{bigram_forward.1} parent=1 // pred_region
      %201 = dma.done [#allocation4], 256
    $region29: #{bigram_forward.1} parent=1 // pred_fallthru
      _
    // Predicated region
    $region30: #{bigram_forward.1} parent=1 // pred_check
      _
    $region31: #{bigram_forward.1} parent=1 // pred_check_branch
      %203 = sbr.rel (0) target = $region33
    $region32: #{bigram_forward.1} parent=1 // pred_region
      _
    $region33: #{bigram_forward.1} parent=1 // pred_fallthru
      _
    %204 = vsyncpa [#allocation3], 1
    %205 = vsyncpa [#allocation4], 1

</llo_original>
